<compile_context>
chip_gen: v6e
topology: v6e:2x2x1
jax: 0.10.0
libtpu: 0.0.40
codegen_flags: <defaults>
</compile_context>

<pallas_src>
import functools

import jax
import jax.numpy as jnp
from jax.experimental import pallas as pl
from jax.experimental.pallas import tpu as pltpu


def _affine_kernel(x_ref, params_ref, o_ref):
    """x_ref:      (TR, TL) input tile in VMEM
    params_ref: (TR, 2)  per-row [scale, shift] (f32)
    o_ref:      (TR, TL) output tile (aliased with the input in HBM)
    """
    p = params_ref[...]                    # (TR, 2)
    scale = p[:, 0:1]                      # (TR, 1)
    shift = p[:, 1:2]                      # (TR, 1)
    x = x_ref[...].astype(jnp.float32)
    o_ref[...] = (x * scale + shift).astype(o_ref.dtype)


# Per-block budget in BYTES: 4 MiB. Double-buffered input + aliased output
# blocks keep ~16 MiB in flight, comfortably under the 48 MiB scoped limit we
# request (v7x physical VMEM is 64 MiB; v5e/v6e have 128 MiB physical).
_BLOCK_BUDGET_BYTES = 4 * 1024 * 1024
_VMEM_LIMIT_BYTES = 48 << 20


def _sublane_align(dtype):
    """Sublane packing granularity: 8 rows for f32, 16 for bf16, 32 for int8."""
    return max(8, 32 // jnp.dtype(dtype).itemsize)


def _select_tiles(R, L, itemsize, align):
    """Pick (TR, TL) block shape under the byte budget.

    Prefers full-row blocks (one contiguous HBM region per DMA). Falls back to
    lane-dense 128-multiple column tiles only when `align` full rows exceed
    the budget. Never returns a non-128-multiple column tile narrower than L.
    """
    row_bytes = L * itemsize
    if align * row_bytes <= _BLOCK_BUDGET_BYTES:
        TL = L
        tr = (_BLOCK_BUDGET_BYTES // row_bytes) // align * align
        if tr >= R:
            if R > align:
                # Split into >=2 row blocks so both v7x TensorCores get work.
                half = -(-R // 2)                      # ceil(R / 2)
                tr = min(R, -(-half // align) * align)  # round up to align
            else:
                tr = R                                  # full-dim block (legal)
        return tr, TL

    # A single aligned row-group exceeds the budget: wide 128-multiple columns.
    TR = align if R >= align else R
    if L <= 128:
        return TR, L
    TL = (_BLOCK_BUDGET_BYTES // (align * itemsize)) // 128 * 128
    TL = max(128, min(TL, (L // 128) * 128))
    return TR, TL


def _affine_pallas(x2d, params):
    """Tiled, pipelined per-row affine: out[r, l] = x[r, l]*scale[r] + shift[r].

    Output is aliased onto the input (in-place in HBM).
    """
    R, L = x2d.shape
    itemsize = x2d.dtype.itemsize
    align = _sublane_align(x2d.dtype)
    TR, TL = _select_tiles(R, L, itemsize, align)
    grid = (pl.cdiv(R, TR), pl.cdiv(L, TL))
    bytes_x = R * L * itemsize

    return pl.pallas_call(
        _affine_kernel,
        out_shape=jax.ShapeDtypeStruct((R, L), x2d.dtype),
        grid=grid,
        in_specs=[
            pl.BlockSpec((TR, TL), lambda i, j: (i, j)),
            # Params depend only on the row tile; reused across column tiles.
            pl.BlockSpec((TR, 2), lambda i, j: (i, 0)),
        ],
        out_specs=pl.BlockSpec((TR, TL), lambda i, j: (i, j)),
        input_output_aliases={0: 0},
        compiler_params=pltpu.CompilerParams(
            dimension_semantics=("parallel", "parallel"),
            vmem_limit_bytes=_VMEM_LIMIT_BYTES),
        cost_estimate=pl.CostEstimate(
            flops=2 * R * L,
            transcendentals=0,
            bytes_accessed=2 * bytes_x + R * 2 * 4),
    )(x2d, params)


@functools.partial(jax.jit, static_argnums=(4,), donate_argnums=(0,))
def _random_apply_jit(x_nchw, scale_c, shift_c, key, p):
    N, C, H, W = x_nchw.shape
    R, L = N * C, H * W

    # Flatten to a lane-dense 2D layout; pack per-row [scale, shift].
    x2d = x_nchw.reshape(R, L)
    params = jnp.stack(
        [jnp.tile(scale_c.astype(jnp.float32), (N,)),
         jnp.tile(shift_c.astype(jnp.float32), (N,))],
        axis=-1)                                       # (R, 2)

    # Device-side gate mirroring `random.random() > p ? x : fn(x)`.
    u = jax.random.uniform(key, (), dtype=jnp.float32)
    gate = u <= jnp.float32(p)

    # With x donated and the pallas output aliased to its input, neither
    # branch needs a fresh HBM round-trip for the pass-through data.
    out2d = jax.lax.cond(
        gate,
        lambda: _affine_pallas(x2d, params),
        lambda: x2d,
    )
    return out2d.reshape(N, C, H, W)


def random_apply(x_nchw, scale_c, shift_c, p, key):
    """RandomApply(fn=per-channel affine, p) forward pass.

    x_nchw : (N, C, H, W)
    scale_c: (C,) float32   fn parameters
    shift_c: (C,) float32
    p      : float          probability of applying fn
    key    : PRNG key for the Bernoulli gate (mirrors random.random())

    NOTE: x_nchw is donated (may be invalidated after this call).
    """
    p = float(p)
    if p <= 0.0:
        return x_nchw
    return _random_apply_jit(x_nchw, scale_c, shift_c, key, p)


if __name__ == "__main__":
    key = jax.random.PRNGKey(0)
    k_x, k_gate = jax.random.split(key)

    N, C, H, W = 2, 4, 16, 16
    x = jax.random.normal(k_x, (N, C, H, W), dtype=jnp.float32)

    # Deterministic fn parameters (per-channel affine "jitter").
    scale = 1.0 + 0.1 * jnp.arange(C, dtype=jnp.float32) / C
    shift = 0.01 * jnp.arange(C, dtype=jnp.float32)

    p = 0.8

    # Reference of the gated semantics in plain JAX — computed (and
    # materialized) BEFORE the donating call so x's buffer is still live.
    u = jax.random.uniform(k_gate, (), dtype=jnp.float32)
    fn_x = x * scale.reshape(1, C, 1, 1) + shift.reshape(1, C, 1, 1)
    ref = jnp.where(u <= p, fn_x, x)
    ref = jax.block_until_ready(ref)

    out = random_apply(x, scale, shift, p, k_gate)
    out = jax.block_until_ready(out)

    assert jnp.allclose(out, ref, atol=1e-6), "mismatch vs reference"
    print("KERNEL_OK")
</pallas_src>

<mosaic_0001>
module attributes {stable_mosaic.version = 11 : i64} {
  func.func @_affine_kernel(%arg0: i32, %arg1: i32, %arg2: memref<8x256xf32, #tpu.memory_space<vmem>>, %arg3: memref<8x2xf32, #tpu.memory_space<vmem>>, %arg4: memref<8x256xf32, #tpu.memory_space<vmem>>) attributes {dimension_semantics = [#tpu.dimension_semantics<parallel>, #tpu.dimension_semantics<parallel>], iteration_bounds = array<i64: 1, 1>, scalar_prefetch = 0 : i64, scratch_operands = 0 : i64, tpu.core_type = #tpu.core_type<tc>, window_params = [{transform_indices = @transform_0, window_bounds = array<i64: 8, 256>}, {transform_indices = @transform_1, window_bounds = array<i64: 8, 2>}, {transform_indices = @transform_2, window_bounds = array<i64: 8, 256>}]} {
    %c0 = arith.constant 0 : index
    %c0_0 = arith.constant 0 : index
    %0 = vector.load %arg3[%c0, %c0_0] : memref<8x2xf32, #tpu.memory_space<vmem>>, vector<8x2xf32>
    %1 = vector.extract_strided_slice %0 {offsets = [0, 0], sizes = [8, 1], strides = [1, 1]} : vector<8x2xf32> to vector<8x1xf32>
    %2 = vector.extract_strided_slice %0 {offsets = [0, 1], sizes = [8, 1], strides = [1, 1]} : vector<8x2xf32> to vector<8x1xf32>
    %c0_1 = arith.constant 0 : index
    %c0_2 = arith.constant 0 : index
    %3 = vector.load %arg2[%c0_1, %c0_2] : memref<8x256xf32, #tpu.memory_space<vmem>>, vector<8x256xf32>
    %4 = vector.broadcast %1 : vector<8x1xf32> to vector<8x256xf32>
    %5 = arith.mulf %3, %4 : vector<8x256xf32>
    %6 = vector.broadcast %2 : vector<8x1xf32> to vector<8x256xf32>
    %7 = arith.addf %5, %6 : vector<8x256xf32>
    %c0_3 = arith.constant 0 : index
    %c0_4 = arith.constant 0 : index
    %8 = vector.load %arg4[%c0_3, %c0_4] : memref<8x256xf32, #tpu.memory_space<vmem>>, vector<8x256xf32>
    tpu.vector_store %arg4[%c0_3, %c0_4], %7 {strides = array<i32>} : memref<8x256xf32, #tpu.memory_space<vmem>>, vector<8x256xf32>,
    return
  }
  func.func @transform_0(%arg0: i32, %arg1: i32) -> (i32, i32) {
    %c0_i32 = arith.constant 0 : i32
    return %arg0, %arg1 : i32, i32
  }
  func.func @transform_1(%arg0: i32, %arg1: i32) -> (i32, i32) {
    %c0_i32 = arith.constant 0 : i32
    %c0_i32_0 = arith.constant 0 : i32
    return %arg0, %c0_i32 : i32, i32
  }
  func.func @transform_2(%arg0: i32, %arg1: i32) -> (i32, i32) {
    %c0_i32 = arith.constant 0 : i32
    return %arg0, %arg1 : i32, i32
  }
}

</mosaic_0001>

<llo_original>
// kernel: tile.18
$region0: #{tile.18}
  %s0 = inlined_call_operand.vmem [shape: f32[2,4], index: 0, kind: input, shape index: {}]
  %s1 = inlined_call_operand.vmem [shape: f32[8,1], index: 1, kind: output, shape index: {}]
  $region1: #{tile.18} parent=0
    #allocation0 [shape = 'u8[4096]{0}', space=vmem, size = 0x1000, scoped, tag = 'scoped mem for output reshape']
    #allocation1 [shape = 'u8[4096]{0}', space=vmem, size = 0x1000, scoped, tag = 'scoped mem for input reshape']
    %s3 = sshll.u32 1, 2
    %s4 = ssub.s32 %s3, 1
    %v5 = vld [vmem:[%s0] sm:%s4]
    %6 = vst [vmem:[#allocation1] sm:%s4] %v5
    %v7 = vld [vmem:[#allocation1] sm:$0x1]
    %vm8 = vcmask 31744
    %9 = vst.msk [vmem:[#allocation0] sm:$0x1] %vm8, %v7
    %s10 = scalar_lea.vmem [#allocation1], 1
    %v11 = vld [vmem:[%s10] sm:$0x1]
    %12 = vrot.lane.b32.xlu0 %v11, 4
    %v13 = vpop.permute.xlu0 %12
    %vm14 = vcmask 64544
    %15 = vst.msk [vmem:[#allocation0] sm:$0x1] %vm14, %v13
    %s17 = sshll.u32 1, 1
    %s18 = ssub.s32 %s17, 1
    %v20 = vld [vmem:[#allocation0] sm:%s18]
    %s21 = sshll.u32 1, 1
    %s22 = ssub.s32 %s21, 1
    %23 = vst [vmem:[%s1] sm:%s22] %v20

// kernel: tile.13
$region0: #{tile.13}
  #allocation0 [shape = 's32[1]{0}', space=sflag, size = 0x4, scoped, tag = 'scoped memory for tile.13']
  %s0 = inlined_call_operand.vmem [shape: f32[4], index: 0, kind: input, shape index: {}]
  %s1 = inlined_call_operand.vmem [shape: f32[2,4], index: 1, kind: output, shape index: {}]
  // Predicated region
  $region2: #{tile.13} parent=0 // pred_check
    _
  $region3: #{tile.13} parent=0 // pred_check_branch
    %3 = sbr.rel (0) target = $region5
  $region4: #{tile.13} parent=0 // pred_region
    _
  $region5: #{tile.13} parent=0 // pred_fallthru
    _
  %v4 = vld [vmem:[%s0] ss:$0 sm:$0xff]
  %5 = vst [vmem:[%s1] sm:$0x3] %v4

// kernel: branch_1_fun.1
$region0: #{branch_1_fun.1}
  #allocation0 [shape = 'u32[]', space=smem, size = 0x4, offset = 0x4, fixed_abs, tag = 'smem constant byte address 0x4 - core index']
  #allocation1 [shape = 'u32[144,128]{1,0:T(1,128)}', space=vmem, size = 0x12000, scoped, tag = 'internal scratch']
  %s0 = inlined_call_operand.vmem [shape: f32[8,256], index: 0, kind: input, shape index: {}, may-alias: {0,2}]
  %s1 = inlined_call_operand.vmem [shape: f32[8,2], index: 1, kind: input, shape index: {}]
  %s2 = inlined_call_operand.vmem [shape: f32[8,256], index: 2, kind: output, shape index: {}, may-alias: {0,2}]
  %s3 = sld [smem:[#allocation0]]
  $region18: #{branch_1_fun.1} parent=0
    _
  %s5 = ssub.s32 1, %s3
  %s6 = scalar_select 0, %s5, %s3
  // Predicated region
  $region2: #{branch_1_fun.1} parent=0 // pred_check
    _
  $region3: #{branch_1_fun.1} parent=0 // pred_check_branch
    %8 = sbr.rel (0) target = $region5
  $region4: #{branch_1_fun.1} parent=0 // pred_region
    _
  $region5: #{branch_1_fun.1} parent=0 // pred_fallthru
    _
  // Predicated region
  $region6: #{branch_1_fun.1} parent=0 // pred_check
    _
  $region7: #{branch_1_fun.1} parent=0 // pred_check_branch
    %10 = sbr.rel (0) target = $region9
  $region8: #{branch_1_fun.1} parent=0 // pred_region
    _
  $region9: #{branch_1_fun.1} parent=0 // pred_fallthru
    _
  %v11 = vld [vmem:[%s1] sm:$0xff]
  %v12 = vld [vmem:[%s0] sm:$0xff]
  %v13 = vld [vmem:[%s0 + $0x8] sm:$0xff]
  %15 = vset.pattern.permute.xlu0 0
  %16 = vperm.xlu0 %15, %v11
  %v17 = vpop.permute.xlu0 %16
  %v19 = vmul.f32 %v12, %v17
  %v20 = vmul.f32 %v13, %v17
  %21 = vset.pattern.permute.xlu0 1
  %22 = vperm.xlu0 %21, %v11
  %v23 = vpop.permute.xlu0 %22
  %v25 = vadd.f32 %v19, %v23
  %v26 = vadd.f32 %v20, %v23
  %27 = vst [vmem:[%s2] sm:$0xff] %v25
  %28 = vst [vmem:[%s2 + $0x8] sm:$0xff] %v26
  // Predicated region
  $region10: #{branch_1_fun.1} parent=0 // pred_check
    _
  $region11: #{branch_1_fun.1} parent=0 // pred_check_branch
    %30 = sbr.rel (0) target = $region13
  $region12: #{branch_1_fun.1} parent=0 // pred_region
    _
  $region13: #{branch_1_fun.1} parent=0 // pred_fallthru
    _
  // Predicated region
  $region14: #{branch_1_fun.1} parent=0 // pred_check
    _
  $region15: #{branch_1_fun.1} parent=0 // pred_check_branch
    %32 = sbr.rel (0) target = $region17
  $region16: #{branch_1_fun.1} parent=0 // pred_region
    _
  $region17: #{branch_1_fun.1} parent=0 // pred_fallthru
    _

</llo_original>
